<compile_context>
chip_gen: v7x
topology: tpu7x:2x2x1
jax: 0.10.0
libtpu: 0.0.40
codegen_flags: <defaults>
</compile_context>

<pallas_src>
import functools

import jax
import jax.numpy as jnp
from jax import lax
from jax.experimental import pallas as pl
from jax.experimental.pallas import tpu as pltpu


# --------------------------- per-chip configuration ---------------------------
def _chip_config():
    """VMEM budget / LSTM chunk / megacore batch split per TPU generation."""
    try:
        vmem = pltpu.get_tpu_info().vmem_capacity_bytes
    except Exception:
        vmem = 64 * 1024 * 1024
    if vmem <= 64 * 1024 * 1024:
        # v7x: 64 MiB VMEM per TC, 2 TCs per chip.
        return {"vmem_limit": 48 * 1024 * 1024, "chunk": 4, "split_batch": True}
    # v5e / v6e: 128 MiB VMEM, single TC.
    return {"vmem_limit": 80 * 1024 * 1024, "chunk": 16, "split_batch": False}


_CFG = _chip_config()


# ----------------------- tiled linear (matmul + bias) -------------------------
def _linear_kernel(x_ref, w_ref, b_ref, o_ref):
    x = x_ref[...]
    if x.dtype != jnp.bfloat16:          # skip the cast when already bf16
        x = x.astype(jnp.bfloat16)
    acc = jnp.dot(x, w_ref[...], preferred_element_type=jnp.float32)
    o_ref[...] = (acc + b_ref[...]).astype(o_ref.dtype)


def linear_forward(x, w_t, b, *, out_dtype=jnp.float32, tm=512, tn=512):
    """x: (M, K); w_t: (K, N) bf16; b: (1, N) f32 -> (M, N) out_dtype.

    K is a single block (embed/hidden size fits VMEM even at 1024); M and N are
    tiled with both grid axes parallel.  Larger tm -> fewer weight re-streams.
    """
    M, K = x.shape
    N = w_t.shape[-1]
    tm = M if M <= tm else tm            # full dim or a multiple of 8
    tn = N if N <= tn else tn            # full dim or a multiple of 128
    grid = (pl.cdiv(M, tm), pl.cdiv(N, tn))
    return pl.pallas_call(
        _linear_kernel,
        out_shape=jax.ShapeDtypeStruct((M, N), out_dtype),
        grid_spec=pltpu.PrefetchScalarGridSpec(
            num_scalar_prefetch=0,
            grid=grid,
            in_specs=[
                pl.BlockSpec((tm, K), lambda i, j: (i, 0)),   # activations
                pl.BlockSpec((K, tn), lambda i, j: (0, j)),   # weights (bf16)
                pl.BlockSpec((1, tn), lambda i, j: (0, j)),   # bias (f32)
            ],
            out_specs=pl.BlockSpec((tm, tn), lambda i, j: (i, j)),
        ),
        compiler_params=pltpu.CompilerParams(
            dimension_semantics=("parallel", "parallel"),
            vmem_limit_bytes=_CFG["vmem_limit"]),
    )(x, w_t, b)


# ------------------------------ LSTM recurrence -------------------------------
def _lstm_kernel(gx_ref, h0_ref, c0_ref, whh_ref,
                 out_ref, hN_ref, cN_ref, h_s, c_s, *, hidden_size, chunk):
    t = pl.program_id(1)

    @pl.when(t == 0)
    def _():
        h_s[...] = h0_ref[...]
        c_s[...] = c0_ref[...]

    H = hidden_size
    w_hh = whh_ref[...]                  # (H, 4H) bf16, gate order [i|f|o|g]

    def step(i, carry):
        h, c = carry
        # bf16 precomputed input projection + f32 recurrent matmul (promotes).
        gates = gx_ref[i] + jnp.dot(h.astype(jnp.bfloat16), w_hh,
                                    preferred_element_type=jnp.float32)   # (tb, 4H) f32
        sig = jax.nn.sigmoid(gates[:, :3 * H])       # one contiguous EUP push: i|f|o
        g_g = jnp.tanh(gates[:, 3 * H:])
        i_g = sig[:, 0 * H:1 * H]                    # lane-aligned slices (H % 128 == 0)
        f_g = sig[:, 1 * H:2 * H]
        o_g = sig[:, 2 * H:3 * H]
        c = f_g * c + i_g * g_g
        h = o_g * jnp.tanh(c)
        out_ref[:, pl.ds(i, 1), :] = h[:, None, :].astype(out_ref.dtype)
        return h, c

    h, c = lax.fori_loop(0, chunk, step, (h_s[...], c_s[...]), unroll=True)
    h_s[...] = h
    c_s[...] = c

    @pl.when(t == pl.num_programs(1) - 1)            # final states: last step only
    def _():
        hN_ref[...] = h.astype(hN_ref.dtype)
        cN_ref[...] = c.astype(cN_ref.dtype)


def _pick_chunk(S, target):
    """Divisor of S nearest to `target` whose output block stays tile-aligned
    (second-to-last dim multiple of 8, or the full S)."""
    target = max(1, min(target, S))
    aligned = [c for c in range(1, S + 1) if S % c == 0 and (c % 8 == 0 or c == S)]
    if aligned:
        return min(aligned, key=lambda c: (abs(c - target), c))
    return max(c for c in range(1, S + 1) if S % c == 0)


def lstm_forward(gates_x, h0, c0, w_hh_t, *, chunk=None, batch_tile=None):
    """gates_x: (S, B, 4H) bf16 (x@W_ih^T + b already applied); h0/c0: (B, H) f32;
    w_hh_t: (H, 4H) bf16, gate order [i|f|o|g].
    Returns out (B, S, H) bf16, hN (B, H) f32, cN (B, H) f32."""
    S, B, G = gates_x.shape
    H = h0.shape[-1]

    chunk = _pick_chunk(S, _CFG["chunk"] if chunk is None else chunk)

    if batch_tile is None:
        # v7x megacore: split the serial recurrence's batch across the 2 TCs,
        # but only when each half keeps the MXU M dimension reasonably fed.
        if _CFG["split_batch"] and B >= 32 and (B // 2) % 16 == 0:
            batch_tile = B // 2
        else:
            batch_tile = B
    tb = min(batch_tile, B)
    while B % tb:
        tb -= 1

    kernel = functools.partial(_lstm_kernel, hidden_size=H, chunk=chunk)
    grid = (B // tb, S // chunk)          # batch tiles parallel, time arbitrary
    out, hN, cN = pl.pallas_call(
        kernel,
        out_shape=(
            jax.ShapeDtypeStruct((B, S, H), jnp.bfloat16),
            jax.ShapeDtypeStruct((B, H), jnp.float32),
            jax.ShapeDtypeStruct((B, H), jnp.float32),
        ),
        grid_spec=pltpu.PrefetchScalarGridSpec(
            num_scalar_prefetch=0,
            grid=grid,
            in_specs=[
                pl.BlockSpec((chunk, tb, G), lambda b, t: (t, b, 0)),   # gates_x chunk (bf16)
                pl.BlockSpec((tb, H), lambda b, t: (b, 0)),             # h0
                pl.BlockSpec((tb, H), lambda b, t: (b, 0)),             # c0
                pl.BlockSpec((H, G), lambda b, t: (0, 0)),              # W_hh^T (bf16)
            ],
            out_specs=[
                pl.BlockSpec((tb, chunk, H), lambda b, t: (b, t, 0)),   # out (batch-major, bf16)
                pl.BlockSpec((tb, H), lambda b, t: (b, 0)),             # final h
                pl.BlockSpec((tb, H), lambda b, t: (b, 0)),             # final c
            ],
            scratch_shapes=[
                pltpu.VMEM((tb, H), jnp.float32),                       # h state (f32)
                pltpu.VMEM((tb, H), jnp.float32),                       # c state (f32)
            ],
        ),
        compiler_params=pltpu.CompilerParams(
            dimension_semantics=("parallel", "arbitrary"),
            vmem_limit_bytes=_CFG["vmem_limit"]),
    )(gates_x, h0, c0, w_hh_t)
    return out, hN, cN


# ------------------------------ RNNLM forward ---------------------------------
def rnnlm_forward(tokens, h0, c0, params):
    """tokens: (B, S) int32; h0/c0: (1, B, H).
    Returns logits (B*S, V) f32 and (h, c) each (1, B, H) -- matches RNNLM.forward."""
    B, S = tokens.shape
    H = h0.shape[-1]

    # Embedding gather, produced directly in time-major order (no activation
    # transpose in HBM; only the tiny int token matrix is transposed).  bf16
    # table halves gather traffic.
    # TODO(synk): the gather itself stays in XLA; a Pallas version would need a
    # manual DMA gather (pl.ANY + make_async_copy), not a rectangular BlockSpec.
    emb_sbe = jnp.take(params["embed"], tokens.T, axis=0)          # (S, B, E) bf16
    E = emb_sbe.shape[-1]

    # Hoisted input projection: one big MXU matmul over all S*B rows, fused
    # (b_ih + b_hh) bias, emitted in bf16 (largest intermediate).
    gates_x = linear_forward(emb_sbe.reshape(S * B, E),
                             params["w_ih_t"], params["lstm_bias"],
                             out_dtype=jnp.bfloat16)
    gates_x = gates_x.reshape(S, B, 4 * H)                          # time-major

    out_bsh, hN, cN = lstm_forward(gates_x, h0[0], c0[0], params["w_hh_t"])

    # out is already batch-major (B, S, H) bf16: reshape below is free, and the
    # classifier consumes bf16 activations directly (no in-kernel cast).
    logits = linear_forward(out_bsh.reshape(B * S, H),
                            params["w_lin_t"], params["lin_bias"],
                            out_dtype=jnp.float32)
    return logits, (hN[None], cN[None])


# ---------------------------- weight preparation -------------------------------
def _reorder_ifgo_to_ifog(x, H):
    """Reorder the 4H gate axis from PyTorch's [i|f|g|o] to kernel [i|f|o|g]."""
    return jnp.concatenate(
        [x[..., 0 * H:1 * H], x[..., 1 * H:2 * H],
         x[..., 3 * H:4 * H], x[..., 2 * H:3 * H]], axis=-1)


def prepare_params(weights_f32, hidden_size):
    """f32 master weights (PyTorch layout, transposed) -> kernel params:
    bf16 matmul weights, [i|f|o|g] gate order, f32 biases, bf16 embed table."""
    H = hidden_size
    return {
        "embed":     weights_f32["embed"].astype(jnp.bfloat16),
        "w_ih_t":    _reorder_ifgo_to_ifog(weights_f32["w_ih_t"], H).astype(jnp.bfloat16),
        "w_hh_t":    _reorder_ifgo_to_ifog(weights_f32["w_hh_t"], H).astype(jnp.bfloat16),
        "lstm_bias": _reorder_ifgo_to_ifog(weights_f32["lstm_bias"], H),
        "w_lin_t":   weights_f32["w_lin_t"].astype(jnp.bfloat16),
        "lin_bias":  weights_f32["lin_bias"],
    }


# --------------------------- reference (pure f32 JAX) --------------------------
def rnnlm_reference(tokens, h0, c0, weights):
    emb = jnp.take(weights["embed"], tokens, axis=0)               # (B, S, E) f32
    B, S, _ = emb.shape
    H = h0.shape[-1]
    h, c = h0[0], c0[0]
    outs = []
    for t in range(S):
        gates = emb[:, t] @ weights["w_ih_t"] + h @ weights["w_hh_t"] + weights["lstm_bias"]
        i_g = jax.nn.sigmoid(gates[:, 0 * H:1 * H])                # PyTorch order i,f,g,o
        f_g = jax.nn.sigmoid(gates[:, 1 * H:2 * H])
        g_g = jnp.tanh(gates[:, 2 * H:3 * H])
        o_g = jax.nn.sigmoid(gates[:, 3 * H:4 * H])
        c = f_g * c + i_g * g_g
        h = o_g * jnp.tanh(c)
        outs.append(h)
    out = jnp.stack(outs, axis=1).reshape(B * S, H)
    logits = out @ weights["w_lin_t"] + weights["lin_bias"]
    return logits, (h[None], c[None])


# ------------------------------------ main -------------------------------------
if __name__ == "__main__":
    # Small shapes consistent with the module (scaled down from 128/1024).
    # H is a multiple of 128 for lane-aligned gate slices; B=8 fills sublanes.
    vocab_size, embed_size, hidden_size, num_layers = 256, 128, 128, 1
    batch, seq = 8, 16

    key = jax.random.PRNGKey(0)
    keys = jax.random.split(key, 8)
    k = 1.0 / (hidden_size ** 0.5)

    # f32 "master" weights in PyTorch layout (transposed so kernels do x @ W^T),
    # gate order [i|f|g|o].  The reference uses these directly.
    weights_f32 = {
        "embed":     jax.random.normal(keys[0], (vocab_size, embed_size), jnp.float32),
        "w_ih_t":    jax.random.uniform(keys[1], (embed_size, 4 * hidden_size),
                                        jnp.float32, -k, k),
        "w_hh_t":    jax.random.uniform(keys[2], (hidden_size, 4 * hidden_size),
                                        jnp.float32, -k, k),
        "lstm_bias": (jax.random.uniform(keys[3], (1, 4 * hidden_size), jnp.float32, -k, k)
                      + jax.random.uniform(keys[4], (1, 4 * hidden_size), jnp.float32, -k, k)),
        "w_lin_t":   jax.random.uniform(keys[5], (hidden_size, vocab_size),
                                        jnp.float32, -k, k),
        "lin_bias":  jax.random.uniform(keys[6], (1, vocab_size), jnp.float32, -k, k),
    }
    params = prepare_params(weights_f32, hidden_size)

    tokens = jax.random.randint(keys[7], (batch, seq), 0, vocab_size, jnp.int32)
    h0 = jnp.zeros((num_layers, batch, hidden_size), jnp.float32)
    c0 = jnp.zeros((num_layers, batch, hidden_size), jnp.float32)

    logits, (hN, cN) = rnnlm_forward(tokens, h0, c0, params)
    jax.block_until_ready((logits, hN, cN))

    ref_logits, (ref_h, ref_c) = rnnlm_reference(tokens, h0, c0, weights_f32)
    assert logits.shape == (batch * seq, vocab_size)
    assert hN.shape == (num_layers, batch, hidden_size)
    assert cN.shape == (num_layers, batch, hidden_size)
    # Tolerances loosened vs. the pure-f32 reference because matmul operands,
    # the embedding table, gates_x and the LSTM output run in bf16 (h/c state,
    # gate accumulation and biases stay f32).
    assert jnp.allclose(logits, ref_logits, atol=5e-2, rtol=5e-2)
    assert jnp.allclose(hN, ref_h, atol=5e-2, rtol=5e-2)
    assert jnp.allclose(cN, ref_c, atol=5e-2, rtol=5e-2)

    print("KERNEL_OK")
</pallas_src>

<mosaic_0001>
module attributes {stable_mosaic.version = 11 : i64} {
  func.func @_linear_kernel(%arg0: i32, %arg1: i32, %arg2: memref<128x128xbf16, #tpu.memory_space<vmem>>, %arg3: memref<128x512xbf16, #tpu.memory_space<vmem>>, %arg4: memref<1x512xf32, #tpu.memory_space<vmem>>, %arg5: memref<128x512xbf16, #tpu.memory_space<vmem>>) attributes {dimension_semantics = [#tpu.dimension_semantics<parallel>, #tpu.dimension_semantics<parallel>], iteration_bounds = array<i64: 1, 1>, scalar_prefetch = 0 : i64, scratch_operands = 0 : i64, tpu.core_type = #tpu.core_type<tc>, window_params = [{transform_indices = @transform_0, window_bounds = array<i64: 128, 128>}, {transform_indices = @transform_1, window_bounds = array<i64: 128, 512>}, {transform_indices = @transform_2, window_bounds = array<i64: 1, 512>}, {transform_indices = @transform_3, window_bounds = array<i64: 128, 512>}]} {
    %c0 = arith.constant 0 : index
    %c0_0 = arith.constant 0 : index
    %0 = vector.load %arg2[%c0, %c0_0] : memref<128x128xbf16, #tpu.memory_space<vmem>>, vector<128x128xbf16>
    %c0_1 = arith.constant 0 : index
    %c0_2 = arith.constant 0 : index
    %1 = vector.load %arg3[%c0_1, %c0_2] : memref<128x512xbf16, #tpu.memory_space<vmem>>, vector<128x512xbf16>
    %cst = arith.constant dense<0.000000e+00> : vector<128x512xf32>
    %2 = tpu.matmul %0, %1, %cst {dimension_numbers = #tpu.dot_dimension_numbers<[1], [0], [0], [1], [0, 0, 1, 1], [], []>} : vector<128x128xbf16>, vector<128x512xbf16>, vector<128x512xf32> -> vector<128x512xf32>
    %c0_3 = arith.constant 0 : index
    %c0_4 = arith.constant 0 : index
    %3 = vector.load %arg4[%c0_3, %c0_4] : memref<1x512xf32, #tpu.memory_space<vmem>>, vector<1x512xf32>
    %4 = vector.broadcast %3 : vector<1x512xf32> to vector<128x512xf32>
    %5 = arith.addf %2, %4 : vector<128x512xf32>
    %6 = arith.truncf %5 : vector<128x512xf32> to vector<128x512xbf16>
    %c0_5 = arith.constant 0 : index
    %c0_6 = arith.constant 0 : index
    %7 = vector.load %arg5[%c0_5, %c0_6] : memref<128x512xbf16, #tpu.memory_space<vmem>>, vector<128x512xbf16>
    tpu.vector_store %arg5[%c0_5, %c0_6], %6 {strides = array<i32>} : memref<128x512xbf16, #tpu.memory_space<vmem>>, vector<128x512xbf16>,
    return
  }
  func.func @transform_0(%arg0: i32, %arg1: i32) -> (i32, i32) {
    %c0_i32 = arith.constant 0 : i32
    %c0_i32_0 = arith.constant 0 : i32
    return %arg0, %c0_i32 : i32, i32
  }
  func.func @transform_1(%arg0: i32, %arg1: i32) -> (i32, i32) {
    %c0_i32 = arith.constant 0 : i32
    %c0_i32_0 = arith.constant 0 : i32
    return %c0_i32, %arg1 : i32, i32
  }
  func.func @transform_2(%arg0: i32, %arg1: i32) -> (i32, i32) {
    %c0_i32 = arith.constant 0 : i32
    %c0_i32_0 = arith.constant 0 : i32
    return %c0_i32, %arg1 : i32, i32
  }
  func.func @transform_3(%arg0: i32, %arg1: i32) -> (i32, i32) {
    %c0_i32 = arith.constant 0 : i32
    return %arg0, %arg1 : i32, i32
  }
}

</mosaic_0001>

<llo_original>
// kernel: tpu_custom_call.1
$region0: #{tpu_custom_call.1}
  #allocation0 [shape = 'u32[]', space=smem, size = 0x4, offset = 0x4, fixed_abs, tag = 'smem constant byte address 0x4 - core index']
  #allocation1 [shape = 'u32[144,128]{1,0:T(1,128)}', space=vmem, size = 0x12000, scoped, tag = 'internal scratch']
  %s0 = inlined_call_operand.hbm [shape: bf16[128,128], index: 0, kind: input, shape index: {}]
  %s1 = inlined_call_operand.hbm [shape: bf16[128,512], index: 1, kind: input, shape index: {}]
  %s2 = inlined_call_operand.vmem [shape: f32[1,512], index: 2, kind: input, shape index: {}]
  %s3 = inlined_call_operand.hbm [shape: bf16[128,512], index: 3, kind: output, shape index: {}]
  %s4 = sld [smem:[#allocation0]]
  $region30: #{tpu_custom_call.1} parent=0
    _
  %s6 = ssub.s32 1, %s4
  %s7 = scalar_select 0, %s6, %s4
  $region1: #{tpu_custom_call.1} parent=0
    #allocation2 [shape = 'u8[32768]{0}', space=vmem, size = 0x8000, scoped, tag = 'input window, operand 0, single buffered']
    #allocation3 [shape = 's32[1]{0}', space=sflag, size = 0x4, scoped, tag = 'scoped memory for tpu_custom_call.1']
    #allocation4 [shape = 's32[1]{0}', space=sflag, size = 0x4, scoped, tag = 'scoped memory for tpu_custom_call.1']
    #allocation5 [shape = 'u8[131072]{0}', space=vmem, size = 0x20000, scoped, tag = 'input window, operand 1, single buffered']
    #allocation6 [shape = 's32[1]{0}', space=sflag, size = 0x4, scoped, tag = 'scoped memory for tpu_custom_call.1']
    #allocation7 [shape = 'u8[131072]{0}', space=vmem, size = 0x20000, scoped, tag = 'output window, operand 0, single buffered']
    %8 = vsyncpa [#allocation3], 0
    %9 = vsyncpa [#allocation6], 0
    %10 = vsyncpa [#allocation4], 0
    // Predicated region
    $region2: #{tpu_custom_call.1} parent=1 // pred_check
      _
    $region3: #{tpu_custom_call.1} parent=1 // pred_check_branch
      %12 = sbr.rel (0) target = $region5
    $region4: #{tpu_custom_call.1} parent=1 // pred_region
      %s14 = ssub.s32 1024, 1024
      %15 = vsyncadd [#allocation3], %s14
      %s16 = sshll.u32 [#allocation2], 4
      %s17 = int_to_ptr.vmem [resolvable:$true] %s16
      %22 = dma.hbm_to_vmem [thread:$0]  %s0, 1024, %s17, [#allocation3], 64, 64, 4
    $region5: #{tpu_custom_call.1} parent=1 // pred_fallthru
      _
    // Predicated region
    $region6: #{tpu_custom_call.1} parent=1 // pred_check
      _
    $region7: #{tpu_custom_call.1} parent=1 // pred_check_branch
      %24 = sbr.rel (0) target = $region9
    $region8: #{tpu_custom_call.1} parent=1 // pred_region
      %s26 = ssub.s32 4096, 4096
      %27 = vsyncadd [#allocation6], %s26
      %s28 = sshll.u32 [#allocation5], 4
      %s29 = int_to_ptr.vmem [resolvable:$true] %s28
      %34 = dma.hbm_to_vmem [thread:$0]  %s1, 4096, %s29, [#allocation6], 256, 256, 16
    $region9: #{tpu_custom_call.1} parent=1 // pred_fallthru
      _
    // Predicated region
    $region10: #{tpu_custom_call.1} parent=1 // pred_check
      _
    $region11: #{tpu_custom_call.1} parent=1 // pred_check_branch
      %36 = sbr.rel (0) target = $region13
    $region12: #{tpu_custom_call.1} parent=1 // pred_region
      _
    $region13: #{tpu_custom_call.1} parent=1 // pred_fallthru
      _
    // Predicated region
    $region14: #{tpu_custom_call.1} parent=1 // pred_check
      _
    $region15: #{tpu_custom_call.1} parent=1 // pred_check_branch
      %38 = sbr.rel (0) target = $region17
    $region16: #{tpu_custom_call.1} parent=1 // pred_region
      %39 = dma.done [#allocation3], 1024
    $region17: #{tpu_custom_call.1} parent=1 // pred_fallthru
      _
    // Predicated region
    $region18: #{tpu_custom_call.1} parent=1 // pred_check
      _
    $region19: #{tpu_custom_call.1} parent=1 // pred_check_branch
      %41 = sbr.rel (0) target = $region21
    $region20: #{tpu_custom_call.1} parent=1 // pred_region
      %42 = dma.done [#allocation6], 4096
    $region21: #{tpu_custom_call.1} parent=1 // pred_fallthru
      _
    %v44 = vld [vmem:[#allocation2] sm:$0xf]
    %v45 = vld [vmem:[#allocation2 + $0x4] sm:$0xf]
    %v46 = vld [vmem:[#allocation2 + $0x8] sm:$0xf]
    %v47 = vld [vmem:[#allocation2 + $0xc] sm:$0xf]
    %v48 = vld [vmem:[#allocation2 + $0x10] sm:$0xf]
    %v49 = vld [vmem:[#allocation2 + $0x14] sm:$0xf]
    %v50 = vld [vmem:[#allocation2 + $0x18] sm:$0xf]
    %v51 = vld [vmem:[#allocation2 + $0x1c] sm:$0xf]
    %v52 = vld [vmem:[#allocation2 + $0x20] sm:$0xf]
    %v53 = vld [vmem:[#allocation2 + $0x24] sm:$0xf]
    %v54 = vld [vmem:[#allocation2 + $0x28] sm:$0xf]
    %v55 = vld [vmem:[#allocation2 + $0x2c] sm:$0xf]
    %v56 = vld [vmem:[#allocation2 + $0x30] sm:$0xf]
    %v57 = vld [vmem:[#allocation2 + $0x34] sm:$0xf]
    %v58 = vld [vmem:[#allocation2 + $0x38] sm:$0xf]
    %v59 = vld [vmem:[#allocation2 + $0x3c] sm:$0xf]
    %v60 = vld [vmem:[#allocation5] sm:$0xff]
    %v61 = vld [vmem:[#allocation5 + $0x8] sm:$0xff]
    %v62 = vld [vmem:[#allocation5 + $0x10] sm:$0xff]
    %v63 = vld [vmem:[#allocation5 + $0x18] sm:$0xff]
    %v64 = vld [vmem:[#allocation5 + $0x20] sm:$0xff]
    %v65 = vld [vmem:[#allocation5 + $0x28] sm:$0xff]
    %v66 = vld [vmem:[#allocation5 + $0x30] sm:$0xff]
    %v67 = vld [vmem:[#allocation5 + $0x38] sm:$0xff]
    %v68 = vld [vmem:[#allocation5 + $0x40] sm:$0xff]
    %v69 = vld [vmem:[#allocation5 + $0x48] sm:$0xff]
    %v70 = vld [vmem:[#allocation5 + $0x50] sm:$0xff]
    %v71 = vld [vmem:[#allocation5 + $0x58] sm:$0xff]
    %v72 = vld [vmem:[#allocation5 + $0x60] sm:$0xff]
    %v73 = vld [vmem:[#allocation5 + $0x68] sm:$0xff]
    %v74 = vld [vmem:[#allocation5 + $0x70] sm:$0xff]
    %v75 = vld [vmem:[#allocation5 + $0x78] sm:$0xff]
    %v76 = vld [vmem:[#allocation5 + $0x80] sm:$0xff]
    %v77 = vld [vmem:[#allocation5 + $0x88] sm:$0xff]
    %v78 = vld [vmem:[#allocation5 + $0x90] sm:$0xff]
    %v79 = vld [vmem:[#allocation5 + $0x98] sm:$0xff]
    %v80 = vld [vmem:[#allocation5 + $0xa0] sm:$0xff]
    %v81 = vld [vmem:[#allocation5 + $0xa8] sm:$0xff]
    %v82 = vld [vmem:[#allocation5 + $0xb0] sm:$0xff]
    %v83 = vld [vmem:[#allocation5 + $0xb8] sm:$0xff]
    %v84 = vld [vmem:[#allocation5 + $0xc0] sm:$0xff]
    %v85 = vld [vmem:[#allocation5 + $0xc8] sm:$0xff]
    %v86 = vld [vmem:[#allocation5 + $0xd0] sm:$0xff]
    %v87 = vld [vmem:[#allocation5 + $0xd8] sm:$0xff]
    %v88 = vld [vmem:[#allocation5 + $0xe0] sm:$0xff]
    %v89 = vld [vmem:[#allocation5 + $0xe8] sm:$0xff]
    %v90 = vld [vmem:[#allocation5 + $0xf0] sm:$0xff]
    %v91 = vld [vmem:[#allocation5 + $0xf8] sm:$0xff]
    %v92 = vld [vmem:[%s2] sm:$0xf]
    %v94 = vlaneseq
    %v95 = vshrl.u32 %v94, 7
    %v96 = vsub.s32 0, %v95
    %v97 = vrot.slane %v92, %v96
    %v98 = vlaneseq
    %v99 = vshrl.u32 %v98, 7
    %v100 = vsub.s32 1, %v99
    %v101 = vrot.slane %v92, %v100
    %v102 = vlaneseq
    %v103 = vshrl.u32 %v102, 7
    %v104 = vsub.s32 2, %v103
    %v105 = vrot.slane %v92, %v104
    %v106 = vlaneseq
    %v107 = vshrl.u32 %v106, 7
    %v108 = vsub.s32 3, %v107
    %v109 = vrot.slane %v92, %v108
    %v130 = vunpack.c.l.b16 %v44
    %v131 = vunpack.c.l.b16 %v45
    %v132 = vunpack.c.l.b16 %v46
    %v133 = vunpack.c.l.b16 %v47
    %v134 = vunpack.c.l.b16 %v48
    %v135 = vunpack.c.l.b16 %v49
    %v136 = vunpack.c.l.b16 %v50
    %v137 = vunpack.c.l.b16 %v51
    %v138 = vunpack.c.l.b16 %v52
    %v139 = vunpack.c.l.b16 %v53
    %v140 = vunpack.c.l.b16 %v54
    %v141 = vunpack.c.l.b16 %v55
    %v142 = vunpack.c.l.b16 %v56
    %v143 = vunpack.c.l.b16 %v57
    %v144 = vunpack.c.l.b16 %v58
    %v145 = vunpack.c.l.b16 %v59
    %v146 = vpack.c.b16 %v131, %v130
    %v147 = vpack.c.b16 %v133, %v132
    %v148 = vpack.c.b16 %v135, %v134
    %v149 = vpack.c.b16 %v137, %v136
    %v150 = vpack.c.b16 %v139, %v138
    %v151 = vpack.c.b16 %v141, %v140
    %v152 = vpack.c.b16 %v143, %v142
    %v153 = vpack.c.b16 %v145, %v144
    %v194 = vunpack.c.l.b16 %v60
    %v195 = vunpack.c.h.b16 %v60
    %v196 = vunpack.c.l.b16 %v61
    %v197 = vunpack.c.h.b16 %v61
    %v198 = vunpack.c.l.b16 %v62
    %v199 = vunpack.c.h.b16 %v62
    %v200 = vunpack.c.l.b16 %v63
    %v201 = vunpack.c.h.b16 %v63
    %v202 = vunpack.c.l.b16 %v64
    %v203 = vunpack.c.h.b16 %v64
    %v204 = vunpack.c.l.b16 %v65
    %v205 = vunpack.c.h.b16 %v65
    %v206 = vunpack.c.l.b16 %v66
    %v207 = vunpack.c.h.b16 %v66
    %v208 = vunpack.c.l.b16 %v67
    %v209 = vunpack.c.h.b16 %v67
    %v210 = vunpack.c.l.b16 %v68
    %v211 = vunpack.c.h.b16 %v68
    %v212 = vunpack.c.l.b16 %v69
    %v213 = vunpack.c.h.b16 %v69
    %v214 = vunpack.c.l.b16 %v70
    %v215 = vunpack.c.h.b16 %v70
    %v216 = vunpack.c.l.b16 %v71
    %v217 = vunpack.c.h.b16 %v71
    %v218 = vunpack.c.l.b16 %v72
    %v219 = vunpack.c.h.b16 %v72
    %v220 = vunpack.c.l.b16 %v73
    %v221 = vunpack.c.h.b16 %v73
    %v222 = vunpack.c.l.b16 %v74
    %v223 = vunpack.c.h.b16 %v74
    %v224 = vunpack.c.l.b16 %v75
    %v225 = vunpack.c.h.b16 %v75
    %v226 = vunpack.c.l.b16 %v76
    %v227 = vunpack.c.h.b16 %v76
    %v228 = vunpack.c.l.b16 %v77
    %v229 = vunpack.c.h.b16 %v77
    %v230 = vunpack.c.l.b16 %v78
    %v231 = vunpack.c.h.b16 %v78
    %v232 = vunpack.c.l.b16 %v79
    %v233 = vunpack.c.h.b16 %v79
    %v234 = vunpack.c.l.b16 %v80
    %v235 = vunpack.c.h.b16 %v80
    %v236 = vunpack.c.l.b16 %v81
    %v237 = vunpack.c.h.b16 %v81
    %v238 = vunpack.c.l.b16 %v82
    %v239 = vunpack.c.h.b16 %v82
    %v240 = vunpack.c.l.b16 %v83
    %v241 = vunpack.c.h.b16 %v83
    %v242 = vunpack.c.l.b16 %v84
    %v243 = vunpack.c.h.b16 %v84
    %v244 = vunpack.c.l.b16 %v85
    %v245 = vunpack.c.h.b16 %v85
    %v246 = vunpack.c.l.b16 %v86
    %v247 = vunpack.c.h.b16 %v86
    %v248 = vunpack.c.l.b16 %v87
    %v249 = vunpack.c.h.b16 %v87
    %v250 = vunpack.c.l.b16 %v88
    %v251 = vunpack.c.h.b16 %v88
    %v252 = vunpack.c.l.b16 %v89
    %v253 = vunpack.c.h.b16 %v89
    %v254 = vunpack.c.l.b16 %v90
    %v255 = vunpack.c.h.b16 %v90
    %v256 = vunpack.c.l.b16 %v91
    %v257 = vunpack.c.h.b16 %v91
    %v258 = vpack.c.b16 %v198, %v194
    %v259 = vpack.c.b16 %v199, %v195
    %v260 = vpack.c.b16 %v200, %v196
    %v261 = vpack.c.b16 %v201, %v197
    %v262 = vpack.c.b16 %v206, %v202
    %v263 = vpack.c.b16 %v207, %v203
    %v264 = vpack.c.b16 %v208, %v204
    %v265 = vpack.c.b16 %v209, %v205
    %v266 = vpack.c.b16 %v214, %v210
    %v267 = vpack.c.b16 %v215, %v211
    %v268 = vpack.c.b16 %v216, %v212
    %v269 = vpack.c.b16 %v217, %v213
    %v270 = vpack.c.b16 %v222, %v218
    %v271 = vpack.c.b16 %v223, %v219
    %v272 = vpack.c.b16 %v224, %v220
    %v273 = vpack.c.b16 %v225, %v221
    %v274 = vpack.c.b16 %v230, %v226
    %v275 = vpack.c.b16 %v231, %v227
    %v276 = vpack.c.b16 %v232, %v228
    %v277 = vpack.c.b16 %v233, %v229
    %v278 = vpack.c.b16 %v238, %v234
    %v279 = vpack.c.b16 %v239, %v235
    %v280 = vpack.c.b16 %v240, %v236
    %v281 = vpack.c.b16 %v241, %v237
    %v282 = vpack.c.b16 %v246, %v242
    %v283 = vpack.c.b16 %v247, %v243
    %v284 = vpack.c.b16 %v248, %v244
    %v285 = vpack.c.b16 %v249, %v245
    %v286 = vpack.c.b16 %v254, %v250
    %v287 = vpack.c.b16 %v255, %v251
    %v288 = vpack.c.b16 %v256, %v252
    %v289 = vpack.c.b16 %v257, %v253
    %322 = vmatprep.subr.bf16.mxu0 %v259
    %323 = vmatpush1.bf16.msra.mxu0 %v258
    %324 = vmatprep.subr.bf16.mxu0 %v263
    %325 = vmatpush1.bf16.msra.mxu0 %v262
    %326 = vmatprep.subr.bf16.mxu0 %v267
    %327 = vmatpush1.bf16.msra.mxu0 %v266
    %328 = vmatprep.subr.bf16.mxu0 %v271
    %329 = vmatpush1.bf16.msra.mxu0 %v270
    %330 = vmatprep.subr.bf16.mxu0 %v275
    %331 = vmatpush1.bf16.msra.mxu0 %v274
    %332 = vmatprep.subr.bf16.mxu0 %v279
    %333 = vmatpush1.bf16.msra.mxu0 %v278
    %334 = vmatprep.subr.bf16.mxu0 %v283
    %335 = vmatpush1.bf16.msra.mxu0 %v282
    %336 = vmatprep.subr.bf16.mxu0 %v287
    %337 = vmatpush1.bf16.msra.mxu0 %v286
    %338 = vmatprep.subr.bf16.mxu0 0
    %339 = vmatpush1.bf16.msra.mxu0 0
    %340 = vmatprep.subr.bf16.mxu0 0
    %341 = vmatpush1.bf16.msra.mxu0 0
    %342 = vmatprep.subr.bf16.mxu0 0
    %343 = vmatpush1.bf16.msra.mxu0 0
    %344 = vmatprep.subr.bf16.mxu0 0
    %345 = vmatpush1.bf16.msra.mxu0 0
    %346 = vmatprep.subr.bf16.mxu0 0
    %347 = vmatpush1.bf16.msra.mxu0 0
    %348 = vmatprep.subr.bf16.mxu0 0
    %349 = vmatpush1.bf16.msra.mxu0 0
    %350 = vmatprep.subr.bf16.mxu0 0
    %351 = vmatpush1.bf16.msra.mxu0 0
    %352 = vmatprep.subr.bf16.mxu0 0
    %353 = vmatpush1.bf16.msra.mxu0 0
    %354 = vmatprep.mubr.bf16.mxu0 0
    %355 = vmatmul.mubr.bf16.gmra.mrb[0].mxu0 %v146
    %v356 = vpop.f32.mrb[0].mxu0
    %v357 = vadd.f32 %v97, %v356
    %v358 = vpop.f32.mrb[0].mxu0
    %v359 = vadd.f32 %v101, %v358
    %v360 = vpop.f32.mrb[0].mxu0
    %v361 = vadd.f32 %v97, %v360
    %v362 = vpop.f32.mrb[0].mxu0
    %v363 = vadd.f32 %v101, %v362
    %364 = vmatprep.mubr.bf16.mxu0 0
    %365 = vmatmul.mubr.bf16.gmra.mrb[0].mxu0 %v147
    %v366 = vpop.f32.mrb[0].mxu0
    %v367 = vadd.f32 %v97, %v366
    %v368 = vpop.f32.mrb[0].mxu0
    %v369 = vadd.f32 %v101, %v368
    %v370 = vpop.f32.mrb[0].mxu0
    %v371 = vadd.f32 %v97, %v370
    %v372 = vpop.f32.mrb[0].mxu0
    %v373 = vadd.f32 %v101, %v372
    %374 = vmatprep.mubr.bf16.mxu0 0
    %375 = vmatmul.mubr.bf16.gmra.mrb[0].mxu0 %v148
    %v376 = vpop.f32.mrb[0].mxu0
    %v377 = vadd.f32 %v97, %v376
    %v378 = vpop.f32.mrb[0].mxu0
    %v379 = vadd.f32 %v101, %v378
    %v380 = vpop.f32.mrb[0].mxu0
    %v381 = vadd.f32 %v97, %v380
    %v382 = vpop.f32.mrb[0].mxu0
    %v383 = vadd.f32 %v101, %v382
    %384 = vmatprep.mubr.bf16.mxu0 0
    %385 = vmatmul.mubr.bf16.gmra.mrb[0].mxu0 %v149
    %v386 = vpop.f32.mrb[0].mxu0
    %v387 = vadd.f32 %v97, %v386
    %v388 = vpop.f32.mrb[0].mxu0
    %v389 = vadd.f32 %v101, %v388
    %v390 = vpop.f32.mrb[0].mxu0
    %v391 = vadd.f32 %v97, %v390
    %v392 = vpop.f32.mrb[0].mxu0
    %v393 = vadd.f32 %v101, %v392
    %394 = vmatprep.mubr.bf16.mxu0 0
    %395 = vmatmul.mubr.bf16.gmra.mrb[0].mxu0 %v150
    %v396 = vpop.f32.mrb[0].mxu0
    %v397 = vadd.f32 %v97, %v396
    %v398 = vpop.f32.mrb[0].mxu0
    %v399 = vadd.f32 %v101, %v398
    %v400 = vpop.f32.mrb[0].mxu0
    %v401 = vadd.f32 %v97, %v400
    %v402 = vpop.f32.mrb[0].mxu0
    %v403 = vadd.f32 %v101, %v402
    %404 = vmatprep.mubr.bf16.mxu0 0
    %405 = vmatmul.mubr.bf16.gmra.mrb[0].mxu0 %v151
    %v406 = vpop.f32.mrb[0].mxu0
    %v407 = vadd.f32 %v97, %v406
    %v408 = vpop.f32.mrb[0].mxu0
    %v409 = vadd.f32 %v101, %v408
    %v410 = vpop.f32.mrb[0].mxu0
    %v411 = vadd.f32 %v97, %v410
    %v412 = vpop.f32.mrb[0].mxu0
    %v413 = vadd.f32 %v101, %v412
    %414 = vmatprep.mubr.bf16.mxu0 0
    %415 = vmatmul.mubr.bf16.gmra.mrb[0].mxu0 %v152
    %v416 = vpop.f32.mrb[0].mxu0
    %v417 = vadd.f32 %v97, %v416
    %v418 = vpop.f32.mrb[0].mxu0
    %v419 = vadd.f32 %v101, %v418
    %v420 = vpop.f32.mrb[0].mxu0
    %v421 = vadd.f32 %v97, %v420
    %v422 = vpop.f32.mrb[0].mxu0
    %v423 = vadd.f32 %v101, %v422
    %424 = vmatprep.mubr.bf16.mxu0 0
    %425 = vmatmul.mubr.bf16.gmra.mrb[0].mxu0 %v153
    %v426 = vpop.f32.mrb[0].mxu0
    %v427 = vadd.f32 %v97, %v426
    %v428 = vpop.f32.mrb[0].mxu0
    %v429 = vadd.f32 %v101, %v428
    %v430 = vpop.f32.mrb[0].mxu0
    %v431 = vadd.f32 %v97, %v430
    %v432 = vpop.f32.mrb[0].mxu0
    %v433 = vadd.f32 %v101, %v432
    %434 = vdwg.mxu0
    %435 = vmatprep.subr.bf16.mxu0 %v261
    %436 = vmatpush1.bf16.msra.mxu0 %v260
    %437 = vmatprep.subr.bf16.mxu0 %v265
    %438 = vmatpush1.bf16.msra.mxu0 %v264
    %439 = vmatprep.subr.bf16.mxu0 %v269
    %440 = vmatpush1.bf16.msra.mxu0 %v268
    %441 = vmatprep.subr.bf16.mxu0 %v273
    %442 = vmatpush1.bf16.msra.mxu0 %v272
    %443 = vmatprep.subr.bf16.mxu0 %v277
    %444 = vmatpush1.bf16.msra.mxu0 %v276
    %445 = vmatprep.subr.bf16.mxu0 %v281
    %446 = vmatpush1.bf16.msra.mxu0 %v280
    %447 = vmatprep.subr.bf16.mxu0 %v285
    %448 = vmatpush1.bf16.msra.mxu0 %v284
    %449 = vmatprep.subr.bf16.mxu0 %v289
    %450 = vmatpush1.bf16.msra.mxu0 %v288
    %451 = vmatprep.subr.bf16.mxu0 0
    %452 = vmatpush1.bf16.msra.mxu0 0
    %453 = vmatprep.subr.bf16.mxu0 0
    %454 = vmatpush1.bf16.msra.mxu0 0
    %455 = vmatprep.subr.bf16.mxu0 0
    %456 = vmatpush1.bf16.msra.mxu0 0
    %457 = vmatprep.subr.bf16.mxu0 0
    %458 = vmatpush1.bf16.msra.mxu0 0
    %459 = vmatprep.subr.bf16.mxu0 0
    %460 = vmatpush1.bf16.msra.mxu0 0
    %461 = vmatprep.subr.bf16.mxu0 0
    %462 = vmatpush1.bf16.msra.mxu0 0
    %463 = vmatprep.subr.bf16.mxu0 0
    %464 = vmatpush1.bf16.msra.mxu0 0
    %465 = vmatprep.subr.bf16.mxu0 0
    %466 = vmatpush1.bf16.msra.mxu0 0
    %467 = vmatprep.mubr.bf16.mxu0 0
    %468 = vmatmul.mubr.bf16.gmra.mrb[0].mxu0 %v146
    %v469 = vpop.f32.mrb[0].mxu0
    %v470 = vadd.f32 %v105, %v469
    %v471 = vpop.f32.mrb[0].mxu0
    %v472 = vadd.f32 %v109, %v471
    %v473 = vpop.f32.mrb[0].mxu0
    %v474 = vadd.f32 %v105, %v473
    %v475 = vpop.f32.mrb[0].mxu0
    %v476 = vadd.f32 %v109, %v475
    %477 = vmatprep.mubr.bf16.mxu0 0
    %478 = vmatmul.mubr.bf16.gmra.mrb[0].mxu0 %v147
    %v479 = vpop.f32.mrb[0].mxu0
    %v480 = vadd.f32 %v105, %v479
    %v481 = vpop.f32.mrb[0].mxu0
    %v482 = vadd.f32 %v109, %v481
    %v483 = vpop.f32.mrb[0].mxu0
    %v484 = vadd.f32 %v105, %v483
    %v485 = vpop.f32.mrb[0].mxu0
    %v486 = vadd.f32 %v109, %v485
    %487 = vmatprep.mubr.bf16.mxu0 0
    %488 = vmatmul.mubr.bf16.gmra.mrb[0].mxu0 %v148
    %v489 = vpop.f32.mrb[0].mxu0
    %v490 = vadd.f32 %v105, %v489
    %v491 = vpop.f32.mrb[0].mxu0
    %v492 = vadd.f32 %v109, %v491
    %v493 = vpop.f32.mrb[0].mxu0
    %v494 = vadd.f32 %v105, %v493
    %v495 = vpop.f32.mrb[0].mxu0
    %v496 = vadd.f32 %v109, %v495
    %497 = vmatprep.mubr.bf16.mxu0 0
    %498 = vmatmul.mubr.bf16.gmra.mrb[0].mxu0 %v149
    %v499 = vpop.f32.mrb[0].mxu0
    %v500 = vadd.f32 %v105, %v499
    %v501 = vpop.f32.mrb[0].mxu0
    %v502 = vadd.f32 %v109, %v501
    %v503 = vpop.f32.mrb[0].mxu0
    %v504 = vadd.f32 %v105, %v503
    %v505 = vpop.f32.mrb[0].mxu0
    %v506 = vadd.f32 %v109, %v505
    %507 = vmatprep.mubr.bf16.mxu0 0
    %508 = vmatmul.mubr.bf16.gmra.mrb[0].mxu0 %v150
    %v509 = vpop.f32.mrb[0].mxu0
    %v510 = vadd.f32 %v105, %v509
    %v511 = vpop.f32.mrb[0].mxu0
    %v512 = vadd.f32 %v109, %v511
    %v513 = vpop.f32.mrb[0].mxu0
    %v514 = vadd.f32 %v105, %v513
    %v515 = vpop.f32.mrb[0].mxu0
    %v516 = vadd.f32 %v109, %v515
    %517 = vmatprep.mubr.bf16.mxu0 0
    %518 = vmatmul.mubr.bf16.gmra.mrb[0].mxu0 %v151
    %v519 = vpop.f32.mrb[0].mxu0
    %v520 = vadd.f32 %v105, %v519
    %v521 = vpop.f32.mrb[0].mxu0
    %v522 = vadd.f32 %v109, %v521
    %v523 = vpop.f32.mrb[0].mxu0
    %v524 = vadd.f32 %v105, %v523
    %v525 = vpop.f32.mrb[0].mxu0
    %v526 = vadd.f32 %v109, %v525
    %527 = vmatprep.mubr.bf16.mxu0 0
    %528 = vmatmul.mubr.bf16.gmra.mrb[0].mxu0 %v152
    %v529 = vpop.f32.mrb[0].mxu0
    %v530 = vadd.f32 %v105, %v529
    %v531 = vpop.f32.mrb[0].mxu0
    %v532 = vadd.f32 %v109, %v531
    %v533 = vpop.f32.mrb[0].mxu0
    %v534 = vadd.f32 %v105, %v533
    %v535 = vpop.f32.mrb[0].mxu0
    %v536 = vadd.f32 %v109, %v535
    %537 = vmatprep.mubr.bf16.mxu0 0
    %538 = vmatmul.mubr.bf16.gmra.mrb[0].mxu0 %v153
    %v539 = vpop.f32.mrb[0].mxu0
    %v540 = vadd.f32 %v105, %v539
    %v541 = vpop.f32.mrb[0].mxu0
    %v542 = vadd.f32 %v109, %v541
    %v543 = vpop.f32.mrb[0].mxu0
    %v544 = vadd.f32 %v105, %v543
    %v545 = vpop.f32.mrb[0].mxu0
    %v546 = vadd.f32 %v109, %v545
    %547 = vdwg.mxu0
    %v548 = vpack.c.bf16 %v361, %v357
    %v549 = vpack.c.bf16 %v363, %v359
    %v550 = vpack.c.bf16 %v474, %v470
    %v551 = vpack.c.bf16 %v476, %v472
    %v552 = vpack.c.bf16 %v371, %v367
    %v553 = vpack.c.bf16 %v373, %v369
    %v554 = vpack.c.bf16 %v484, %v480
    %v555 = vpack.c.bf16 %v486, %v482
    %v556 = vpack.c.bf16 %v381, %v377
    %v557 = vpack.c.bf16 %v383, %v379
    %v558 = vpack.c.bf16 %v494, %v490
    %v559 = vpack.c.bf16 %v496, %v492
    %v560 = vpack.c.bf16 %v391, %v387
    %v561 = vpack.c.bf16 %v393, %v389
    %v562 = vpack.c.bf16 %v504, %v500
    %v563 = vpack.c.bf16 %v506, %v502
    %v564 = vpack.c.bf16 %v401, %v397
    %v565 = vpack.c.bf16 %v403, %v399
    %v566 = vpack.c.bf16 %v514, %v510
    %v567 = vpack.c.bf16 %v516, %v512
    %v568 = vpack.c.bf16 %v411, %v407
    %v569 = vpack.c.bf16 %v413, %v409
    %v570 = vpack.c.bf16 %v524, %v520
    %v571 = vpack.c.bf16 %v526, %v522
    %v572 = vpack.c.bf16 %v421, %v417
    %v573 = vpack.c.bf16 %v423, %v419
    %v574 = vpack.c.bf16 %v534, %v530
    %v575 = vpack.c.bf16 %v536, %v532
    %v576 = vpack.c.bf16 %v431, %v427
    %v577 = vpack.c.bf16 %v433, %v429
    %v578 = vpack.c.bf16 %v544, %v540
    %v579 = vpack.c.bf16 %v546, %v542
    %v612 = vunpack.c.l.b16 %v548
    %v613 = vunpack.c.l.b16 %v549
    %v614 = vunpack.c.l.b16 %v550
    %v615 = vunpack.c.l.b16 %v551
    %v616 = vunpack.c.h.b16 %v548
    %v617 = vunpack.c.h.b16 %v549
    %v618 = vunpack.c.h.b16 %v550
    %v619 = vunpack.c.h.b16 %v551
    %v620 = vunpack.c.l.b16 %v552
    %v621 = vunpack.c.l.b16 %v553
    %v622 = vunpack.c.l.b16 %v554
    %v623 = vunpack.c.l.b16 %v555
    %v624 = vunpack.c.h.b16 %v552
    %v625 = vunpack.c.h.b16 %v553
    %v626 = vunpack.c.h.b16 %v554
    %v627 = vunpack.c.h.b16 %v555
    %v628 = vunpack.c.l.b16 %v556
    %v629 = vunpack.c.l.b16 %v557
    %v630 = vunpack.c.l.b16 %v558
    %v631 = vunpack.c.l.b16 %v559
    %v632 = vunpack.c.h.b16 %v556
    %v633 = vunpack.c.h.b16 %v557
    %v634 = vunpack.c.h.b16 %v558
    %v635 = vunpack.c.h.b16 %v559
    %v636 = vunpack.c.l.b16 %v560
    %v637 = vunpack.c.l.b16 %v561
    %v638 = vunpack.c.l.b16 %v562
    %v639 = vunpack.c.l.b16 %v563
    %v640 = vunpack.c.h.b16 %v560
    %v641 = vunpack.c.h.b16 %v561
    %v642 = vunpack.c.h.b16 %v562
    %v643 = vunpack.c.h.b16 %v563
    %v644 = vunpack.c.l.b16 %v564
    %v645 = vunpack.c.l.b16 %v565
    %v646 = vunpack.c.l.b16 %v566
    %v647 = vunpack.c.l.b16 %v567
    %v648 = vunpack.c.h.b16 %v564
    %v649 = vunpack.c.h.b16 %v565
    %v650 = vunpack.c.h.b16 %v566
    %v651 = vunpack.c.h.b16 %v567
    %v652 = vunpack.c.l.b16 %v568
    %v653 = vunpack.c.l.b16 %v569
    %v654 = vunpack.c.l.b16 %v570
    %v655 = vunpack.c.l.b16 %v571
    %v656 = vunpack.c.h.b16 %v568
    %v657 = vunpack.c.h.b16 %v569
    %v658 = vunpack.c.h.b16 %v570
    %v659 = vunpack.c.h.b16 %v571
    %v660 = vunpack.c.l.b16 %v572
    %v661 = vunpack.c.l.b16 %v573
    %v662 = vunpack.c.l.b16 %v574
    %v663 = vunpack.c.l.b16 %v575
    %v664 = vunpack.c.h.b16 %v572
    %v665 = vunpack.c.h.b16 %v573
    %v666 = vunpack.c.h.b16 %v574
    %v667 = vunpack.c.h.b16 %v575
    %v668 = vunpack.c.l.b16 %v576
    %v669 = vunpack.c.l.b16 %v577
    %v670 = vunpack.c.l.b16 %v578
    %v671 = vunpack.c.l.b16 %v579
    %v672 = vunpack.c.h.b16 %v576
    %v673 = vunpack.c.h.b16 %v577
    %v674 = vunpack.c.h.b16 %v578
    %v675 = vunpack.c.h.b16 %v579
    %v676 = vpack.c.b16 %v613, %v612
    %v677 = vpack.c.b16 %v615, %v614
    %v678 = vpack.c.b16 %v617, %v616
    %v679 = vpack.c.b16 %v619, %v618
    %v680 = vpack.c.b16 %v621, %v620
    %v681 = vpack.c.b16 %v623, %v622
    %v682 = vpack.c.b16 %v625, %v624
    %v683 = vpack.c.b16 %v627, %v626
    %v684 = vpack.c.b16 %v629, %v628
    %v685 = vpack.c.b16 %v631, %v630
    %v686 = vpack.c.b16 %v633, %v632
    %v687 = vpack.c.b16 %v635, %v634
    %v688 = vpack.c.b16 %v637, %v636
    %v689 = vpack.c.b16 %v639, %v638
    %v690 = vpack.c.b16 %v641, %v640
    %v691 = vpack.c.b16 %v643, %v642
    %v692 = vpack.c.b16 %v645, %v644
    %v693 = vpack.c.b16 %v647, %v646
    %v694 = vpack.c.b16 %v649, %v648
    %v695 = vpack.c.b16 %v651, %v650
    %v696 = vpack.c.b16 %v653, %v652
    %v697 = vpack.c.b16 %v655, %v654
    %v698 = vpack.c.b16 %v657, %v656
    %v699 = vpack.c.b16 %v659, %v658
    %v700 = vpack.c.b16 %v661, %v660
    %v701 = vpack.c.b16 %v663, %v662
    %v702 = vpack.c.b16 %v665, %v664
    %v703 = vpack.c.b16 %v667, %v666
    %v704 = vpack.c.b16 %v669, %v668
    %v705 = vpack.c.b16 %v671, %v670
    %v706 = vpack.c.b16 %v673, %v672
    %v707 = vpack.c.b16 %v675, %v674
    %740 = vst [vmem:[#allocation7] sm:$0xff] %v676
    %741 = vst [vmem:[#allocation7 + $0x8] sm:$0xff] %v677
    %742 = vst [vmem:[#allocation7 + $0x10] sm:$0xff] %v678
    %743 = vst [vmem:[#allocation7 + $0x18] sm:$0xff] %v679
    %744 = vst [vmem:[#allocation7 + $0x20] sm:$0xff] %v680
    %745 = vst [vmem:[#allocation7 + $0x28] sm:$0xff] %v681
    %746 = vst [vmem:[#allocation7 + $0x30] sm:$0xff] %v682
    %747 = vst [vmem:[#allocation7 + $0x38] sm:$0xff] %v683
    %748 = vst [vmem:[#allocation7 + $0x40] sm:$0xff] %v684
    %749 = vst [vmem:[#allocation7 + $0x48] sm:$0xff] %v685
    %750 = vst [vmem:[#allocation7 + $0x50] sm:$0xff] %v686
    %751 = vst [vmem:[#allocation7 + $0x58] sm:$0xff] %v687
    %752 = vst [vmem:[#allocation7 + $0x60] sm:$0xff] %v688
    %753 = vst [vmem:[#allocation7 + $0x68] sm:$0xff] %v689
    %754 = vst [vmem:[#allocation7 + $0x70] sm:$0xff] %v690
    %755 = vst [vmem:[#allocation7 + $0x78] sm:$0xff] %v691
    %756 = vst [vmem:[#allocation7 + $0x80] sm:$0xff] %v692
    %757 = vst [vmem:[#allocation7 + $0x88] sm:$0xff] %v693
    %758 = vst [vmem:[#allocation7 + $0x90] sm:$0xff] %v694
    %759 = vst [vmem:[#allocation7 + $0x98] sm:$0xff] %v695
    %760 = vst [vmem:[#allocation7 + $0xa0] sm:$0xff] %v696
    %761 = vst [vmem:[#allocation7 + $0xa8] sm:$0xff] %v697
    %762 = vst [vmem:[#allocation7 + $0xb0] sm:$0xff] %v698
    %763 = vst [vmem:[#allocation7 + $0xb8] sm:$0xff] %v699
    %764 = vst [vmem:[#allocation7 + $0xc0] sm:$0xff] %v700
    %765 = vst [vmem:[#allocation7 + $0xc8] sm:$0xff] %v701
    %766 = vst [vmem:[#allocation7 + $0xd0] sm:$0xff] %v702
    %767 = vst [vmem:[#allocation7 + $0xd8] sm:$0xff] %v703
    %768 = vst [vmem:[#allocation7 + $0xe0] sm:$0xff] %v704
    %769 = vst [vmem:[#allocation7 + $0xe8] sm:$0xff] %v705
    %770 = vst [vmem:[#allocation7 + $0xf0] sm:$0xff] %v706
    %771 = vst [vmem:[#allocation7 + $0xf8] sm:$0xff] %v707
    // Predicated region
    $region22: #{tpu_custom_call.1} parent=1 // pred_check
      _
    $region23: #{tpu_custom_call.1} parent=1 // pred_check_branch
      %773 = sbr.rel (0) target = $region25
    $region24: #{tpu_custom_call.1} parent=1 // pred_region
      %s775 = ssub.s32 4096, 4096
      %776 = vsyncadd [#allocation4], %s775
      %s777 = sshll.u32 [#allocation7], 4
      %s778 = int_to_ptr.vmem [resolvable:$true] %s777
      %783 = dma.vmem_to_hbm [thread:$0]  %s778, 4096, %s3, [#allocation4], 256, 256, 16
    $region25: #{tpu_custom_call.1} parent=1 // pred_fallthru
      _
    // Predicated region
    $region26: #{tpu_custom_call.1} parent=1 // pred_check
      _
    $region27: #{tpu_custom_call.1} parent=1 // pred_check_branch
      %785 = sbr.rel (0) target = $region29
    $region28: #{tpu_custom_call.1} parent=1 // pred_region
      %786 = dma.done [#allocation4], 4096
    $region29: #{tpu_custom_call.1} parent=1 // pred_fallthru
      _
    %787 = vsyncpa [#allocation3], 1
    %788 = vsyncpa [#allocation6], 1
    %789 = vsyncpa [#allocation4], 1

</llo_original>
